<compile_context>
chip_gen: v6e
topology: v6e:2x2x1
jax: 0.10.0
libtpu: 0.0.40
codegen_flags: <defaults>
</compile_context>

<pallas_src>
import functools

import jax
import jax.numpy as jnp
from jax.experimental import pallas as pl
from jax.experimental.pallas import tpu as pltpu

LANES = 128
SUBLANES = 8
MAX_BLOCK_ROWS = 2048  # 2048x128 f32 = 1 MiB per input tile.


def _round_up(x: int, m: int) -> int:
    return ((x + m - 1) // m) * m


def _sign_mae_kernel(pred_ref, target_ref, partial_ref, *,
                     block_rows, total_rows, lambda_weight, mask_tail):
    i = pl.program_id(0)

    p = pred_ref[...].astype(jnp.float32)
    t = target_ref[...].astype(jnp.float32)

    mae = jnp.abs(p - t)
    # relu(-sign(t) * p) == |p| when p and t have strictly opposite signs, else 0.
    sign_term = jnp.where(p * t < 0.0, jnp.abs(p), 0.0)
    contrib = mae + lambda_weight * sign_term

    if mask_tail:
        # The last grid block may extend past the real row count; those rows
        # hold unspecified data and must be zeroed out of the partial sum.
        row_ids = i * block_rows + jax.lax.broadcasted_iota(jnp.int32, p.shape, 0)
        contrib = jnp.where(row_ids < total_rows, contrib, 0.0)

    # Collapse the block down to one vreg-shaped (8, 128) partial with pure
    # VPU elementwise adds; the cross-lane/sublane reduce happens outside.
    partial = jnp.sum(contrib.reshape(-1, SUBLANES, LANES), axis=0)
    partial_ref[...] = partial.reshape(1, SUBLANES, LANES)


def sign_mae_loss(pred: jax.Array, target: jax.Array,
                  lambda_weight: float = 0.01) -> jax.Array:
    assert pred.shape == target.shape, "pred/target shapes must match"
    n_elements = pred.size
    if n_elements == 0:
        # torch.mean of an empty tensor is NaN.
        return jnp.float32(jnp.nan)

    # Flatten in native dtype (free). Only pad to a multiple of 128 lanes if
    # needed; zero padding contributes 0 to both partial sums.
    pred_f = jnp.ravel(pred)
    target_f = jnp.ravel(target)
    rem = n_elements % LANES
    if rem:
        pad = LANES - rem
        pred_f = jnp.pad(pred_f, (0, pad))
        target_f = jnp.pad(target_f, (0, pad))

    rows = pred_f.size // LANES
    pred2d = pred_f.reshape(rows, LANES)
    target2d = target_f.reshape(rows, LANES)

    block_rows = min(MAX_BLOCK_ROWS, _round_up(rows, SUBLANES))
    num_blocks = -(-rows // block_rows)
    mask_tail = (num_blocks * block_rows) != rows

    kernel = functools.partial(
        _sign_mae_kernel,
        block_rows=block_rows,
        total_rows=rows,
        lambda_weight=float(lambda_weight),
        mask_tail=mask_tail,
    )

    partials = pl.pallas_call(
        kernel,
        out_shape=jax.ShapeDtypeStruct((num_blocks, SUBLANES, LANES), jnp.float32),
        grid_spec=pltpu.PrefetchScalarGridSpec(
            num_scalar_prefetch=0,
            grid=(num_blocks,),
            in_specs=[
                pl.BlockSpec((block_rows, LANES), lambda i: (i, 0)),
                pl.BlockSpec((block_rows, LANES), lambda i: (i, 0)),
            ],
            out_specs=pl.BlockSpec((1, SUBLANES, LANES), lambda i: (i, 0, 0)),
        ),
        compiler_params=pltpu.CompilerParams(
            dimension_semantics=("parallel",),
        ),
    )(pred2d, target2d)

    # Tiny final reduce + global mean scale (num_blocks * 8 * 128 floats).
    return jnp.sum(partials) * (1.0 / float(n_elements))


def _reference_sign_mae_loss(pred, target, lambda_weight=0.01):
    sign_mismatch = jnp.mean(jax.nn.relu(-jnp.sign(target) * pred))
    mae = jnp.mean(jnp.abs(pred - target))
    return mae + lambda_weight * sign_mismatch


if __name__ == "__main__":
    key = jax.random.PRNGKey(0)
    k1, k2 = jax.random.split(key)

    # SignMaeLoss has no weights; lambda_weight = 0.01 (module default).
    shape = (2, 4, 16, 16)
    pred = jax.random.normal(k1, shape, dtype=jnp.float32)
    target = jax.random.normal(k2, shape, dtype=jnp.float32)

    loss = sign_mae_loss(pred, target, lambda_weight=0.01)
    jax.block_until_ready(loss)

    ref = _reference_sign_mae_loss(pred, target, lambda_weight=0.01)
    assert jnp.allclose(loss, ref, rtol=1e-5, atol=1e-6), (loss, ref)

    # Extra correctness checks: non-divisible size (tail masking) and a case
    # with exact zeros in target (sign(0) == 0 path).
    k3, k4 = jax.random.split(k1)
    p2 = jax.random.normal(k3, (3, 5, 7), dtype=jnp.float32)
    t2 = jax.random.normal(k4, (3, 5, 7), dtype=jnp.float32)
    t2 = t2.at[0, 0, :3].set(0.0)
    loss2 = sign_mae_loss(p2, t2, lambda_weight=0.01)
    jax.block_until_ready(loss2)
    ref2 = _reference_sign_mae_loss(p2, t2, lambda_weight=0.01)
    assert jnp.allclose(loss2, ref2, rtol=1e-5, atol=1e-6), (loss2, ref2)

    print("KERNEL_OK")
</pallas_src>

<mosaic_0001>
module attributes {stable_mosaic.version = 11 : i64} {
  func.func @_sign_mae_kernel(%arg0: i32, %arg1: memref<16x128xf32, #tpu.memory_space<vmem>>, %arg2: memref<16x128xf32, #tpu.memory_space<vmem>>, %arg3: memref<1x8x128xf32, #tpu.memory_space<vmem>>) attributes {dimension_semantics = [#tpu.dimension_semantics<parallel>], iteration_bounds = array<i64: 1>, scalar_prefetch = 0 : i64, scratch_operands = 0 : i64, tpu.core_type = #tpu.core_type<tc>, window_params = [{transform_indices = @transform_0, window_bounds = array<i64: 16, 128>}, {transform_indices = @transform_1, window_bounds = array<i64: 16, 128>}, {transform_indices = @transform_2, window_bounds = array<i64: 1, 8, 128>}]} {
    %c0 = arith.constant 0 : index
    %c0_0 = arith.constant 0 : index
    %0 = vector.load %arg1[%c0, %c0_0] : memref<16x128xf32, #tpu.memory_space<vmem>>, vector<16x128xf32>
    %c0_1 = arith.constant 0 : index
    %c0_2 = arith.constant 0 : index
    %1 = vector.load %arg2[%c0_1, %c0_2] : memref<16x128xf32, #tpu.memory_space<vmem>>, vector<16x128xf32>
    %2 = arith.subf %0, %1 : vector<16x128xf32>
    %3 = math.absf %2 : vector<16x128xf32>
    %4 = arith.mulf %0, %1 : vector<16x128xf32>
    %cst = arith.constant 0.000000e+00 : f32
    %5 = vector.broadcast %cst : f32 to vector<16x128xf32>
    %6 = arith.cmpf olt, %4, %5 : vector<16x128xf32>
    %7 = math.absf %0 : vector<16x128xf32>
    %cst_3 = arith.constant 0.000000e+00 : f32
    %8 = vector.broadcast %cst_3 : f32 to vector<16x128xf32>
    %9 = arith.select %6, %7, %8 : vector<16x128xi1>, vector<16x128xf32>
    %cst_4 = arith.constant 0.00999999977 : f32
    %10 = vector.broadcast %cst_4 : f32 to vector<16x128xf32>
    %11 = arith.mulf %10, %9 : vector<16x128xf32>
    %12 = arith.addf %3, %11 : vector<16x128xf32>
    %13 = vector.shape_cast %12 : vector<16x128xf32> to vector<2x8x128xf32>
    %cst_5 = arith.constant dense<0.000000e+00> : vector<8x128xf32>
    %14 = vector.multi_reduction <add>, %13, %cst_5 [0] : vector<2x8x128xf32> to vector<8x128xf32>
    %15 = vector.shape_cast %14 : vector<8x128xf32> to vector<1x8x128xf32>
    %c0_6 = arith.constant 0 : index
    %c0_7 = arith.constant 0 : index
    %c0_8 = arith.constant 0 : index
    %16 = vector.load %arg3[%c0_6, %c0_7, %c0_8] : memref<1x8x128xf32, #tpu.memory_space<vmem>>, vector<1x8x128xf32>
    tpu.vector_store %arg3[%c0_6, %c0_7, %c0_8], %15 {strides = array<i32>} : memref<1x8x128xf32, #tpu.memory_space<vmem>>, vector<1x8x128xf32>,
    return
  }
  func.func @transform_0(%arg0: i32) -> (i32, i32) {
    %c0_i32 = arith.constant 0 : i32
    %c0_i32_0 = arith.constant 0 : i32
    return %arg0, %c0_i32 : i32, i32
  }
  func.func @transform_1(%arg0: i32) -> (i32, i32) {
    %c0_i32 = arith.constant 0 : i32
    %c0_i32_0 = arith.constant 0 : i32
    return %arg0, %c0_i32 : i32, i32
  }
  func.func @transform_2(%arg0: i32) -> (i32, i32, i32) {
    %c0_i32 = arith.constant 0 : i32
    %c0_i32_0 = arith.constant 0 : i32
    %c0_i32_1 = arith.constant 0 : i32
    return %arg0, %c0_i32, %c0_i32_0 : i32, i32, i32
  }
}

</mosaic_0001>

<llo_original>
// kernel: tpu_custom_call.1
$region0: #{tpu_custom_call.1}
  #allocation0 [shape = 'u32[]', space=smem, size = 0x4, offset = 0x4, fixed_abs, tag = 'smem constant byte address 0x4 - core index']
  #allocation1 [shape = 'u32[144,128]{1,0:T(1,128)}', space=vmem, size = 0x12000, scoped, tag = 'internal scratch']
  %s0 = inlined_call_operand.hbm [shape: f32[16,128], index: 0, kind: input, shape index: {}]
  %s1 = inlined_call_operand.hbm [shape: f32[16,128], index: 1, kind: input, shape index: {}]
  %s2 = inlined_call_operand.hbm [shape: f32[1,8,128], index: 2, kind: output, shape index: {}]
  %s3 = sld [smem:[#allocation0]]
  $region26: #{tpu_custom_call.1} parent=0
    _
  %s5 = ssub.s32 1, %s3
  %s6 = scalar_select 0, %s5, %s3
  $region1: #{tpu_custom_call.1} parent=0
    #allocation2 [shape = 'u8[8192]{0}', space=vmem, size = 0x2000, scoped, tag = 'input window, operand 0, single buffered']
    #allocation3 [shape = 's32[1]{0}', space=sflag, size = 0x4, scoped, tag = 'scoped memory for tpu_custom_call.1']
    #allocation4 [shape = 's32[1]{0}', space=sflag, size = 0x4, scoped, tag = 'scoped memory for tpu_custom_call.1']
    #allocation5 [shape = 'u8[8192]{0}', space=vmem, size = 0x2000, scoped, tag = 'input window, operand 1, single buffered']
    #allocation6 [shape = 's32[1]{0}', space=sflag, size = 0x4, scoped, tag = 'scoped memory for tpu_custom_call.1']
    #allocation7 [shape = 'u8[4096]{0}', space=vmem, size = 0x1000, scoped, tag = 'output window, operand 0, single buffered']
    %7 = vsyncpa [#allocation3], 0
    %8 = vsyncpa [#allocation6], 0
    %9 = vsyncpa [#allocation4], 0
    // Predicated region
    $region2: #{tpu_custom_call.1} parent=1 // pred_check
      _
    $region3: #{tpu_custom_call.1} parent=1 // pred_check_branch
      %11 = sbr.rel (0) target = $region5
    $region4: #{tpu_custom_call.1} parent=1 // pred_region
      %s13 = ssub.s32 256, 256
      %14 = vsyncadd [#allocation3], %s13
      %s15 = sshll.u32 [#allocation2], 4
      %s16 = int_to_ptr.vmem [resolvable:$true] %s15
      %21 = dma.hbm_to_vmem [thread:$0]  %s0, 256, %s16, [#allocation3], 128, 128, 8
    $region5: #{tpu_custom_call.1} parent=1 // pred_fallthru
      _
    // Predicated region
    $region6: #{tpu_custom_call.1} parent=1 // pred_check
      _
    $region7: #{tpu_custom_call.1} parent=1 // pred_check_branch
      %23 = sbr.rel (0) target = $region9
    $region8: #{tpu_custom_call.1} parent=1 // pred_region
      %s25 = ssub.s32 256, 256
      %26 = vsyncadd [#allocation6], %s25
      %s27 = sshll.u32 [#allocation5], 4
      %s28 = int_to_ptr.vmem [resolvable:$true] %s27
      %33 = dma.hbm_to_vmem [thread:$0]  %s1, 256, %s28, [#allocation6], 128, 128, 8
    $region9: #{tpu_custom_call.1} parent=1 // pred_fallthru
      _
    // Predicated region
    $region10: #{tpu_custom_call.1} parent=1 // pred_check
      _
    $region11: #{tpu_custom_call.1} parent=1 // pred_check_branch
      %35 = sbr.rel (0) target = $region13
    $region12: #{tpu_custom_call.1} parent=1 // pred_region
      %36 = dma.done [#allocation3], 256
    $region13: #{tpu_custom_call.1} parent=1 // pred_fallthru
      _
    // Predicated region
    $region14: #{tpu_custom_call.1} parent=1 // pred_check
      _
    $region15: #{tpu_custom_call.1} parent=1 // pred_check_branch
      %38 = sbr.rel (0) target = $region17
    $region16: #{tpu_custom_call.1} parent=1 // pred_region
      %39 = dma.done [#allocation6], 256
    $region17: #{tpu_custom_call.1} parent=1 // pred_fallthru
      _
    %v40 = vld [vmem:[#allocation2] sm:$0xff]
    %v41 = vld [vmem:[#allocation2 + $0x8] sm:$0xff]
    %v42 = vld [vmem:[#allocation5] sm:$0xff]
    %v43 = vld [vmem:[#allocation5 + $0x8] sm:$0xff]
    %v44 = vsub.f32 %v40, %v42
    %v45 = vsub.f32 %v41, %v43
    %v46 = vand.u32 2147483647, %v44
    %v47 = vand.u32 2147483647, %v45
    %v48 = vmul.f32 %v40, %v42
    %v49 = vmul.f32 %v41, %v43
    %vm50 = vcmp.lt.f32.partialorder %v48, 0.0
    %vm51 = vcmp.lt.f32.partialorder %v49, 0.0
    %v52 = vand.u32 2147483647, %v40
    %v53 = vand.u32 2147483647, %v41
    %v54 = vsel %vm50, %v52, 0.0
    %v55 = vsel %vm51, %v53, 0.0
    %v56 = vmul.f32 %v54, 0.01
    %v57 = vmul.f32 %v55, 0.01
    %v58 = vadd.f32 %v46, %v56
    %v59 = vadd.f32 %v47, %v57
    %v60 = vadd.f32 %v58, %v59
    %61 = vst [vmem:[#allocation7] sm:$0xff] %v60
    // Predicated region
    $region18: #{tpu_custom_call.1} parent=1 // pred_check
      _
    $region19: #{tpu_custom_call.1} parent=1 // pred_check_branch
      %63 = sbr.rel (0) target = $region21
    $region20: #{tpu_custom_call.1} parent=1 // pred_region
      %s65 = ssub.s32 128, 128
      %66 = vsyncadd [#allocation4], %s65
      %s68 = sshll.u32 [#allocation7], 4
      %s69 = int_to_ptr.vmem [resolvable:$true] %s68
      %71 = dma.vmem_to_hbm [thread:$0]  %s69, 128, %s2, [#allocation4]
    $region21: #{tpu_custom_call.1} parent=1 // pred_fallthru
      _
    // Predicated region
    $region22: #{tpu_custom_call.1} parent=1 // pred_check
      _
    $region23: #{tpu_custom_call.1} parent=1 // pred_check_branch
      %73 = sbr.rel (0) target = $region25
    $region24: #{tpu_custom_call.1} parent=1 // pred_region
      %74 = dma.done [#allocation4], 128
    $region25: #{tpu_custom_call.1} parent=1 // pred_fallthru
      _
    %75 = vsyncpa [#allocation3], 1
    %76 = vsyncpa [#allocation6], 1
    %77 = vsyncpa [#allocation4], 1

</llo_original>
